<compile_context>
chip_gen: v7x
topology: tpu7x:2x2x1
jax: 0.10.0
libtpu: 0.0.40
codegen_flags: <defaults>
</compile_context>

<pallas_src>
import functools

import jax
import jax.numpy as jnp
from jax import lax
from jax.experimental import pallas as pl
from jax.experimental.pallas import tpu as pltpu


# --------------------------------------------------------------------------
# Shared MLP (squeeze -> excite), always in f32
# --------------------------------------------------------------------------
def _se_mlp(pooled, w1, w2):
    """pooled: (TB, C) f32; w1: (Cr, C); w2: (C, Cr)  ->  (TB, C) f32 gate."""
    # h = pooled @ w1.T  (contract the C axis of both; keeps C lane-dense)
    h = lax.dot_general(pooled, w1, (((1,), (1,)), ((), ())),
                        preferred_element_type=jnp.float32)       # (TB, Cr)
    h = jnp.maximum(h, 0.0)                                       # ReLU
    y = lax.dot_general(h, w2, (((1,), (1,)), ((), ())),
                        preferred_element_type=jnp.float32)       # (TB, C)
    return jax.nn.sigmoid(y)


# --------------------------------------------------------------------------
# Kernels
# --------------------------------------------------------------------------
def _se_fused_kernel(x_ref, w1_ref, w2_ref, o_ref):
    # x_ref / o_ref: (TB, C, HW).  Pool straight off the ref with an f32
    # accumulator; no full-block f32 materialization for the pooling step.
    pooled = jnp.mean(x_ref[...], axis=2, dtype=jnp.float32)          # (TB, C)
    y = _se_mlp(pooled, w1_ref[...], w2_ref[...])                     # (TB, C) f32
    # Multiply in f32 (x upcasts against the f32 gate); cast only at the store.
    o_ref[...] = (x_ref[...] * y[:, :, None]).astype(o_ref.dtype)


def _se_pool_kernel(x_ref, pooled_ref, *, hw_total, need_mask):
    # x_ref: (1, TC, THW);  pooled_ref: (1, TC, 1) f32, resident across the
    # (last, "arbitrary") HW grid axis -> accumulate directly into it.
    hw_i = pl.program_id(2)

    @pl.when(hw_i == 0)
    def _():
        pooled_ref[...] = jnp.zeros_like(pooled_ref)

    if need_mask:
        thw = x_ref.shape[2]
        idx = hw_i * thw + lax.broadcasted_iota(jnp.int32, x_ref.shape, 2)
        xv = jnp.where(idx < hw_total, x_ref[...].astype(jnp.float32), 0.0)
        pooled_ref[...] += jnp.sum(xv, axis=2, keepdims=True)
    else:
        pooled_ref[...] += jnp.sum(x_ref[...], axis=2, keepdims=True,
                                   dtype=jnp.float32)

    @pl.when(hw_i == pl.num_programs(2) - 1)
    def _():
        pooled_ref[...] *= jnp.float32(1.0 / hw_total)


def _se_scale_kernel(y_ref, x_ref, o_ref):
    # y_ref: (1, TC, 1) f32 gate;  x_ref / o_ref: (1, TC, THW).
    # Multiply in f32 (broadcast against the f32 gate), store native dtype.
    o_ref[...] = (x_ref[...] * y_ref[...]).astype(o_ref.dtype)


# --------------------------------------------------------------------------
# Budget / tiling helpers
# --------------------------------------------------------------------------
def _tpu_vmem_capacity_bytes():
    try:
        return int(pltpu.get_tpu_info().vmem_capacity_bytes)
    except Exception:                 # unknown target -> assume small (v7x) VMEM
        return 64 << 20


def _default_budgets():
    """(data working-set budget, vmem_limit clamp) for this TPU generation."""
    cap = _tpu_vmem_capacity_bytes()
    if cap >= (96 << 20):             # v5e / v6e: 128 MiB physical VMEM
        return 88 << 20, 100 << 20
    # v7x: 64 MiB physical VMEM per TensorCore -- leave >= 12 MiB headroom.
    return 36 << 20, 46 << 20


def _vmem_limit_bytes(data_ws_bytes, weight_bytes, limit_clamp):
    need = data_ws_bytes + weight_bytes + (4 << 20)      # + compiler headroom
    return int(min(max(need, 16 << 20), limit_clamp))


def _padded_tile_bytes(shape2d, itemsize):
    r, c = shape2d
    return (-(-r // 8) * 8) * (-(-c // 128) * 128) * itemsize


def _sublane_multiple(dtype):
    # 8 for f32, 16 for bf16, 32 for int8/fp8 (packed sublane rows).
    return max(8, 32 // jnp.dtype(dtype).itemsize)


def _pick_batch_block(B, slab_bytes, budget_bytes):
    """Largest divisor TB of B whose double-buffered in+out working set fits
    the budget.  Keep >= 2 grid steps (for DMA/compute overlap) only when it
    does not shrink the per-step block below ~1 MiB."""
    divs = [d for d in range(1, B + 1) if B % d == 0]
    fitting = [d for d in divs if 4 * d * slab_bytes <= budget_bytes]
    if not fitting:
        return 1
    two_step = [d for d in fitting if B // d >= 2]
    if two_step and max(two_step) * slab_bytes >= (1 << 20):
        return max(two_step)
    return max(fitting)


def _pick_hw_tile(HW, tc_min, itemsize, budget_bytes):
    """Largest HW tile (multiple of 128, or == HW) such that even the minimal
    channel tile still double-buffers in+out within the budget."""
    cap = max(128, budget_bytes // (4 * max(tc_min, 1) * itemsize))
    if HW <= cap:
        return HW
    return max(128, (cap // 128) * 128)


def _pick_channel_block(C, sub, thw, itemsize, budget_bytes):
    """Largest channel tile TC (divisor of C, multiple of the dtype sublane
    count, or == C) whose double-buffered in+out working set fits."""
    cands = [d for d in range(1, C + 1)
             if C % d == 0 and (d % sub == 0 or d == C)]
    fitting = [d for d in cands if 4 * d * thw * itemsize <= budget_bytes]
    return max(fitting) if fitting else min(cands)


def _maybe_buffered_spec(block_shape, index_map, block_bytes):
    """3-deep pipelining for small streaming blocks; default double-buffering
    otherwise (or if this jax version lacks pipeline_mode)."""
    if block_bytes < (1 << 20):
        try:
            return pl.BlockSpec(block_shape, index_map,
                                pipeline_mode=pl.Buffered(3))
        except (TypeError, AttributeError):
            pass
    return pl.BlockSpec(block_shape, index_map)


# --------------------------------------------------------------------------
# Wrapper
# --------------------------------------------------------------------------
def se_block(x, w1, w2, *, data_budget_bytes=None):
    """SE block forward.

    x:  (B, C, H, W) activations (f32 or bf16).
    w1: (Cr, C)  = fc[0].weight   (nn.Linear(C, Cr, bias=False))
    w2: (C, Cr)  = fc[2].weight   (nn.Linear(Cr, C, bias=False))
    """
    B, C, H, W = x.shape
    Cr = w1.shape[0]
    assert w1.shape == (Cr, C) and w2.shape == (C, Cr)
    HW = H * W
    itemsize = jnp.dtype(x.dtype).itemsize
    slab = C * HW * itemsize                      # one batch element's bytes

    budget, limit_clamp = _default_budgets()
    if data_budget_bytes is not None:             # test / tuning override
        budget = int(data_budget_bytes)

    # Tiny weights: squeeze/excite MLP always runs in f32.
    w1f = w1.astype(jnp.float32)
    w2f = w2.astype(jnp.float32)
    w_bytes = _padded_tile_bytes((Cr, C), 4) + _padded_tile_bytes((C, Cr), 4)

    x3 = x.reshape(B, C, HW)

    if 4 * slab <= budget:
        # ---- fused single-pass path: 1 HBM read + 1 HBM write per element --
        tb = _pick_batch_block(B, slab, budget)
        blk = (tb, C, HW)

        cost = pl.CostEstimate(
            flops=int(2 * B * C * HW + 4 * B * C * Cr),
            transcendentals=int(B * C),
            bytes_accessed=int(2 * B * slab + w_bytes))

        out = pl.pallas_call(
            _se_fused_kernel,
            out_shape=jax.ShapeDtypeStruct(x3.shape, x.dtype),
            grid_spec=pltpu.PrefetchScalarGridSpec(
                num_scalar_prefetch=0,
                grid=(B // tb,),
                in_specs=[
                    pl.BlockSpec(blk, lambda b: (b, 0, 0)),
                    pl.BlockSpec((Cr, C), lambda b: (0, 0)),
                    pl.BlockSpec((C, Cr), lambda b: (0, 0)),
                ],
                out_specs=pl.BlockSpec(blk, lambda b: (b, 0, 0)),
            ),
            compiler_params=pltpu.CompilerParams(
                dimension_semantics=("parallel",),
                vmem_limit_bytes=_vmem_limit_bytes(4 * tb * slab, w_bytes,
                                                   limit_clamp)),
            cost_estimate=cost,
        )(x3, w1f, w2f)
        return out.reshape(B, C, H, W)

    # ---- two-pass fallback: one batch slab is too big for VMEM -------------
    # TODO(synk): a manual partial-residency variant (keep ~VMEM worth of HW
    # chunks resident between pool and scale via make_async_copy) would shave
    # up to one resident-fraction of an HBM pass on v7x; the simple tiled
    # 3-pass form below is kept for robustness.
    sub = _sublane_multiple(x.dtype)
    thw = _pick_hw_tile(HW, min(sub, C), itemsize, budget)
    tc = _pick_channel_block(C, sub, thw, itemsize, budget)
    hw_steps = pl.cdiv(HW, thw)
    need_mask = (HW % thw) != 0
    blk_bytes = tc * thw * itemsize

    # Pass 1: global average pool -> (B, C, 1) f32, accumulated over HW tiles.
    pool_kernel = functools.partial(_se_pool_kernel, hw_total=HW,
                                    need_mask=need_mask)
    pooled = pl.pallas_call(
        pool_kernel,
        out_shape=jax.ShapeDtypeStruct((B, C, 1), jnp.float32),
        grid_spec=pltpu.PrefetchScalarGridSpec(
            num_scalar_prefetch=0,
            grid=(B, C // tc, hw_steps),
            in_specs=[_maybe_buffered_spec((1, tc, thw),
                                           lambda b, c, h: (b, c, h),
                                           blk_bytes)],
            out_specs=pl.BlockSpec((1, tc, 1), lambda b, c, h: (b, c, 0)),
        ),
        compiler_params=pltpu.CompilerParams(
            dimension_semantics=("parallel", "parallel", "arbitrary"),
            vmem_limit_bytes=_vmem_limit_bytes(4 * blk_bytes, 0, limit_clamp)),
        cost_estimate=pl.CostEstimate(
            flops=int(B * C * HW), transcendentals=0,
            bytes_accessed=int(B * slab + B * C * 4)),
    )(x3)

    # Tiny (B, C) MLP in plain JAX -- negligible next to the HBM streaming.
    y = _se_mlp(pooled[..., 0], w1f, w2f).reshape(B, C, 1)       # f32 gate

    # Pass 2: scale x by the per-channel gate.
    out3 = pl.pallas_call(
        _se_scale_kernel,
        out_shape=jax.ShapeDtypeStruct((B, C, HW), x.dtype),
        grid_spec=pltpu.PrefetchScalarGridSpec(
            num_scalar_prefetch=0,
            grid=(B, C // tc, hw_steps),
            in_specs=[pl.BlockSpec((1, tc, 1), lambda b, c, h: (b, c, 0)),
                      _maybe_buffered_spec((1, tc, thw),
                                           lambda b, c, h: (b, c, h),
                                           blk_bytes)],
            out_specs=pl.BlockSpec((1, tc, thw), lambda b, c, h: (b, c, h)),
        ),
        compiler_params=pltpu.CompilerParams(
            dimension_semantics=("parallel", "parallel", "parallel"),
            vmem_limit_bytes=_vmem_limit_bytes(4 * blk_bytes, 0, limit_clamp)),
        cost_estimate=pl.CostEstimate(
            flops=int(B * C * HW), transcendentals=0,
            bytes_accessed=int(2 * B * slab + B * C * 4)),
    )(y, x3)
    return out3.reshape(B, C, H, W)


# --------------------------------------------------------------------------
# Pure-JAX reference (identical semantics to the PyTorch module)
# --------------------------------------------------------------------------
def se_block_ref(x, w1, w2):
    xf = x.astype(jnp.float32)
    pooled = jnp.mean(xf, axis=(2, 3))                           # (B, C)
    h = jnp.maximum(pooled @ w1.astype(jnp.float32).T, 0.0)      # (B, Cr)
    y = jax.nn.sigmoid(h @ w2.astype(jnp.float32).T)             # (B, C)
    return (xf * y[:, :, None, None]).astype(x.dtype)


if __name__ == "__main__":
    key = jax.random.PRNGKey(0)

    def run_case(k, B, C, H, W, reduction, **kw):
        Cr = max(1, C // reduction)
        kx, k1, k2 = jax.random.split(k, 3)
        x = jax.random.normal(kx, (B, C, H, W), dtype=jnp.float32)
        w1 = jax.random.normal(k1, (Cr, C), dtype=jnp.float32) * 0.1
        w2 = jax.random.normal(k2, (C, Cr), dtype=jnp.float32) * 0.1
        out = jax.block_until_ready(se_block(x, w1, w2, **kw))
        ref = se_block_ref(x, w1, w2)
        assert out.shape == x.shape
        assert jnp.allclose(out, ref, atol=1e-5, rtol=1e-5), (B, C, H, W, kw)

    ks = jax.random.split(key, 4)
    # 1) Fused single-pass path (ch_in=64, reduction=16; HW=256 lane-aligned).
    run_case(ks[0], B=2, C=64, H=16, W=16, reduction=16)
    # 2) Fused path with HW not a multiple of 128 (masked stores, no transpose).
    run_case(ks[1], B=2, C=128, H=5, W=5, reduction=16)
    # 3) Two-pass C/HW-tiled fallback, HW tile divides HW (tiny forced budget).
    run_case(ks[2], B=2, C=64, H=16, W=16, reduction=16,
             data_budget_bytes=128 * 1024)
    # 4) Two-pass fallback with a partial (masked) trailing HW tile.
    run_case(ks[3], B=2, C=64, H=24, W=24, reduction=16,
             data_budget_bytes=64 * 1024)

    print("KERNEL_OK")
</pallas_src>

<mosaic_0001>
module attributes {stable_mosaic.version = 11 : i64} {
  func.func @_se_fused_kernel(%arg0: i32, %arg1: memref<2x64x256xf32, #tpu.memory_space<vmem>>, %arg2: memref<4x64xf32, #tpu.memory_space<vmem>>, %arg3: memref<64x4xf32, #tpu.memory_space<vmem>>, %arg4: memref<2x64x256xf32, #tpu.memory_space<vmem>>) attributes {dimension_semantics = [#tpu.dimension_semantics<parallel>], iteration_bounds = array<i64: 1>, scalar_prefetch = 0 : i64, scratch_operands = 0 : i64, tpu.core_type = #tpu.core_type<tc>, window_params = [{transform_indices = @transform_0, window_bounds = array<i64: 2, 64, 256>}, {pipeline_mode = #tpu.pipeline_mode<synchronous>, transform_indices = @transform_1, window_bounds = array<i64: 4, 64>}, {pipeline_mode = #tpu.pipeline_mode<synchronous>, transform_indices = @transform_2, window_bounds = array<i64: 64, 4>}, {transform_indices = @transform_3, window_bounds = array<i64: 2, 64, 256>}]} {
    %c0 = arith.constant 0 : index
    %c0_0 = arith.constant 0 : index
    %c0_1 = arith.constant 0 : index
    %0 = vector.load %arg1[%c0, %c0_0, %c0_1] : memref<2x64x256xf32, #tpu.memory_space<vmem>>, vector<2x64x256xf32>
    %cst = arith.constant dense<0.000000e+00> : vector<2x64xf32>
    %1 = vector.multi_reduction <add>, %0, %cst [2] : vector<2x64x256xf32> to vector<2x64xf32>
    %cst_2 = arith.constant 2.560000e+02 : f32
    %2 = vector.broadcast %cst_2 : f32 to vector<2x64xf32>
    %3 = arith.divf %1, %2 : vector<2x64xf32>
    %c0_3 = arith.constant 0 : index
    %c0_4 = arith.constant 0 : index
    %4 = vector.load %arg2[%c0_3, %c0_4] : memref<4x64xf32, #tpu.memory_space<vmem>>, vector<4x64xf32>
    %c0_5 = arith.constant 0 : index
    %c0_6 = arith.constant 0 : index
    %5 = vector.load %arg3[%c0_5, %c0_6] : memref<64x4xf32, #tpu.memory_space<vmem>>, vector<64x4xf32>
    %cst_7 = arith.constant dense<0.000000e+00> : vector<2x4xf32>
    %6 = tpu.matmul %3, %4, %cst_7 {dimension_numbers = #tpu.dot_dimension_numbers<[1], [1], [0], [0], [0, 0, 1, 0], [], []>} : vector<2x64xf32>, vector<4x64xf32>, vector<2x4xf32> -> vector<2x4xf32>
    %cst_8 = arith.constant 0.000000e+00 : f32
    %7 = vector.broadcast %cst_8 : f32 to vector<2x4xf32>
    %8 = arith.maximumf %6, %7 : vector<2x4xf32>
    %cst_9 = arith.constant dense<0.000000e+00> : vector<2x64xf32>
    %9 = tpu.matmul %8, %5, %cst_9 {dimension_numbers = #tpu.dot_dimension_numbers<[1], [1], [0], [0], [0, 0, 1, 0], [], []>} : vector<2x4xf32>, vector<64x4xf32>, vector<2x64xf32> -> vector<2x64xf32>
    %10 = arith.negf %9 : vector<2x64xf32>
    %11 = math.exp %10 : vector<2x64xf32>
    %cst_10 = arith.constant 1.000000e+00 : f32
    %12 = vector.broadcast %cst_10 : f32 to vector<2x64xf32>
    %13 = arith.addf %12, %11 : vector<2x64xf32>
    %14 = arith.divf %12, %13 : vector<2x64xf32>
    %c0_11 = arith.constant 0 : index
    %c0_12 = arith.constant 0 : index
    %c0_13 = arith.constant 0 : index
    %15 = vector.load %arg1[%c0_11, %c0_12, %c0_13] : memref<2x64x256xf32, #tpu.memory_space<vmem>>, vector<2x64x256xf32>
    %16 = vector.shape_cast %14 : vector<2x64xf32> to vector<2x64x1xf32>
    %17 = vector.broadcast %16 : vector<2x64x1xf32> to vector<2x64x256xf32>
    %18 = arith.mulf %15, %17 : vector<2x64x256xf32>
    %c0_14 = arith.constant 0 : index
    %c0_15 = arith.constant 0 : index
    %c0_16 = arith.constant 0 : index
    %19 = vector.load %arg4[%c0_14, %c0_15, %c0_16] : memref<2x64x256xf32, #tpu.memory_space<vmem>>, vector<2x64x256xf32>
    tpu.vector_store %arg4[%c0_14, %c0_15, %c0_16], %18 {strides = array<i32>} : memref<2x64x256xf32, #tpu.memory_space<vmem>>, vector<2x64x256xf32>,
    return
  }
  func.func @transform_0(%arg0: i32) -> (i32, i32, i32) {
    %c0_i32 = arith.constant 0 : i32
    %c0_i32_0 = arith.constant 0 : i32
    %c0_i32_1 = arith.constant 0 : i32
    return %arg0, %c0_i32, %c0_i32_0 : i32, i32, i32
  }
  func.func @transform_1(%arg0: i32) -> (i32, i32) {
    %c0_i32 = arith.constant 0 : i32
    %c0_i32_0 = arith.constant 0 : i32
    %c0_i32_1 = arith.constant 0 : i32
    return %c0_i32, %c0_i32_0 : i32, i32
  }
  func.func @transform_2(%arg0: i32) -> (i32, i32) {
    %c0_i32 = arith.constant 0 : i32
    %c0_i32_0 = arith.constant 0 : i32
    %c0_i32_1 = arith.constant 0 : i32
    return %c0_i32, %c0_i32_0 : i32, i32
  }
  func.func @transform_3(%arg0: i32) -> (i32, i32, i32) {
    %c0_i32 = arith.constant 0 : i32
    %c0_i32_0 = arith.constant 0 : i32
    %c0_i32_1 = arith.constant 0 : i32
    return %arg0, %c0_i32, %c0_i32_0 : i32, i32, i32
  }
}

</mosaic_0001>

<llo_original>
// kernel: tpu_custom_call.1
$region0: #{tpu_custom_call.1}
  #allocation0 [shape = 'u32[]', space=smem, size = 0x4, offset = 0x4, fixed_abs, tag = 'smem constant byte address 0x4 - core index']
  #allocation1 [shape = 'u32[144,128]{1,0:T(1,128)}', space=vmem, size = 0x12000, scoped, tag = 'internal scratch']
  %s0 = inlined_call_operand.hbm [shape: f32[2,64,256], index: 0, kind: input, shape index: {}]
  %s1 = inlined_call_operand.vmem [shape: f32[4,64], index: 1, kind: input, shape index: {}]
  %s2 = inlined_call_operand.vmem [shape: f32[64,4], index: 2, kind: input, shape index: {}]
  %s3 = inlined_call_operand.hbm [shape: f32[2,64,256], index: 3, kind: output, shape index: {}]
  %s4 = sld [smem:[#allocation0]]
  $region26: #{tpu_custom_call.1} parent=0
    _
  %s6 = ssub.s32 1, %s4
  %s7 = scalar_select 0, %s6, %s4
  $region1: #{tpu_custom_call.1} parent=0
    #allocation2 [shape = 'u8[131072]{0}', space=vmem, size = 0x20000, scoped, tag = 'input window, operand 0, single buffered']
    #allocation3 [shape = 's32[1]{0}', space=sflag, size = 0x4, scoped, tag = 'scoped memory for tpu_custom_call.1']
    #allocation4 [shape = 's32[1]{0}', space=sflag, size = 0x4, scoped, tag = 'scoped memory for tpu_custom_call.1']
    #allocation5 [shape = 'u8[131072]{0}', space=vmem, size = 0x20000, scoped, tag = 'output window, operand 0, single buffered']
    %8 = vsyncpa [#allocation3], 0
    %9 = vsyncpa [#allocation4], 0
    // Predicated region
    $region2: #{tpu_custom_call.1} parent=1 // pred_check
      _
    $region3: #{tpu_custom_call.1} parent=1 // pred_check_branch
      %11 = sbr.rel (0) target = $region5
    $region4: #{tpu_custom_call.1} parent=1 // pred_region
      %s13 = ssub.s32 4096, 4096
      %14 = vsyncadd [#allocation3], %s13
      %s15 = sshll.u32 [#allocation2], 4
      %s16 = int_to_ptr.vmem [resolvable:$true] %s15
      %21 = dma.hbm_to_vmem [thread:$0]  %s0, 4096, %s16, [#allocation3], 256, 256, 16
    $region5: #{tpu_custom_call.1} parent=1 // pred_fallthru
      _
    // Predicated region
    $region6: #{tpu_custom_call.1} parent=1 // pred_check
      _
    $region7: #{tpu_custom_call.1} parent=1 // pred_check_branch
      %23 = sbr.rel (0) target = $region9
    $region8: #{tpu_custom_call.1} parent=1 // pred_region
      _
    $region9: #{tpu_custom_call.1} parent=1 // pred_fallthru
      _
    // Predicated region
    $region10: #{tpu_custom_call.1} parent=1 // pred_check
      _
    $region11: #{tpu_custom_call.1} parent=1 // pred_check_branch
      %25 = sbr.rel (0) target = $region13
    $region12: #{tpu_custom_call.1} parent=1 // pred_region
      _
    $region13: #{tpu_custom_call.1} parent=1 // pred_fallthru
      _
    // Predicated region
    $region14: #{tpu_custom_call.1} parent=1 // pred_check
      _
    $region15: #{tpu_custom_call.1} parent=1 // pred_check_branch
      %27 = sbr.rel (0) target = $region17
    $region16: #{tpu_custom_call.1} parent=1 // pred_region
      %28 = dma.done [#allocation3], 4096
    $region17: #{tpu_custom_call.1} parent=1 // pred_fallthru
      _
    %v29 = vld [vmem:[#allocation2] sm:$0xff]
    %v30 = vld [vmem:[#allocation2 + $0x8] sm:$0xff]
    %v31 = vld [vmem:[#allocation2 + $0x10] sm:$0xff]
    %v32 = vld [vmem:[#allocation2 + $0x18] sm:$0xff]
    %v33 = vld [vmem:[#allocation2 + $0x20] sm:$0xff]
    %v34 = vld [vmem:[#allocation2 + $0x28] sm:$0xff]
    %v35 = vld [vmem:[#allocation2 + $0x30] sm:$0xff]
    %v36 = vld [vmem:[#allocation2 + $0x38] sm:$0xff]
    %v37 = vld [vmem:[#allocation2 + $0x40] sm:$0xff]
    %v38 = vld [vmem:[#allocation2 + $0x48] sm:$0xff]
    %v39 = vld [vmem:[#allocation2 + $0x50] sm:$0xff]
    %v40 = vld [vmem:[#allocation2 + $0x58] sm:$0xff]
    %v41 = vld [vmem:[#allocation2 + $0x60] sm:$0xff]
    %v42 = vld [vmem:[#allocation2 + $0x68] sm:$0xff]
    %v43 = vld [vmem:[#allocation2 + $0x70] sm:$0xff]
    %v44 = vld [vmem:[#allocation2 + $0x78] sm:$0xff]
    %v45 = vld [vmem:[#allocation2 + $0x80] sm:$0xff]
    %v46 = vld [vmem:[#allocation2 + $0x88] sm:$0xff]
    %v47 = vld [vmem:[#allocation2 + $0x90] sm:$0xff]
    %v48 = vld [vmem:[#allocation2 + $0x98] sm:$0xff]
    %v49 = vld [vmem:[#allocation2 + $0xa0] sm:$0xff]
    %v50 = vld [vmem:[#allocation2 + $0xa8] sm:$0xff]
    %v51 = vld [vmem:[#allocation2 + $0xb0] sm:$0xff]
    %v52 = vld [vmem:[#allocation2 + $0xb8] sm:$0xff]
    %v53 = vld [vmem:[#allocation2 + $0xc0] sm:$0xff]
    %v54 = vld [vmem:[#allocation2 + $0xc8] sm:$0xff]
    %v55 = vld [vmem:[#allocation2 + $0xd0] sm:$0xff]
    %v56 = vld [vmem:[#allocation2 + $0xd8] sm:$0xff]
    %v57 = vld [vmem:[#allocation2 + $0xe0] sm:$0xff]
    %v58 = vld [vmem:[#allocation2 + $0xe8] sm:$0xff]
    %v59 = vld [vmem:[#allocation2 + $0xf0] sm:$0xff]
    %v60 = vld [vmem:[#allocation2 + $0xf8] sm:$0xff]
    %v61 = vadd.f32 %v29, %v30
    %62 = vadd.xlane.f32.xlu0 %v61
    %v63 = vpop.xlane.xlu0 %62
    %v64 = vadd.f32 %v31, %v32
    %65 = vadd.xlane.f32.xlu0 %v64
    %v66 = vpop.xlane.xlu0 %65
    %v67 = vadd.f32 %v33, %v34
    %68 = vadd.xlane.f32.xlu0 %v67
    %v69 = vpop.xlane.xlu0 %68
    %v70 = vadd.f32 %v35, %v36
    %71 = vadd.xlane.f32.xlu0 %v70
    %v72 = vpop.xlane.xlu0 %71
    %v73 = vadd.f32 %v37, %v38
    %74 = vadd.xlane.f32.xlu0 %v73
    %v75 = vpop.xlane.xlu0 %74
    %v76 = vadd.f32 %v39, %v40
    %77 = vadd.xlane.f32.xlu0 %v76
    %v78 = vpop.xlane.xlu0 %77
    %v79 = vadd.f32 %v41, %v42
    %80 = vadd.xlane.f32.xlu0 %v79
    %v81 = vpop.xlane.xlu0 %80
    %v82 = vadd.f32 %v43, %v44
    %83 = vadd.xlane.f32.xlu0 %v82
    %v84 = vpop.xlane.xlu0 %83
    %v85 = vadd.f32 %v45, %v46
    %86 = vadd.xlane.f32.xlu0 %v85
    %v87 = vpop.xlane.xlu0 %86
    %v88 = vadd.f32 %v47, %v48
    %89 = vadd.xlane.f32.xlu0 %v88
    %v90 = vpop.xlane.xlu0 %89
    %v91 = vadd.f32 %v49, %v50
    %92 = vadd.xlane.f32.xlu0 %v91
    %v93 = vpop.xlane.xlu0 %92
    %v94 = vadd.f32 %v51, %v52
    %95 = vadd.xlane.f32.xlu0 %v94
    %v96 = vpop.xlane.xlu0 %95
    %v97 = vadd.f32 %v53, %v54
    %98 = vadd.xlane.f32.xlu0 %v97
    %v99 = vpop.xlane.xlu0 %98
    %v100 = vadd.f32 %v55, %v56
    %101 = vadd.xlane.f32.xlu0 %v100
    %v102 = vpop.xlane.xlu0 %101
    %v103 = vadd.f32 %v57, %v58
    %104 = vadd.xlane.f32.xlu0 %v103
    %v105 = vpop.xlane.xlu0 %104
    %v106 = vadd.f32 %v59, %v60
    %107 = vadd.xlane.f32.xlu0 %v106
    %v108 = vpop.xlane.xlu0 %107
    %v109 = vrcp.pop 256.0
    %v110 = vmul.f32 %v63, %v109
    %v111 = vmul.f32 %v66, %v109
    %v112 = vmul.f32 %v69, %v109
    %v113 = vmul.f32 %v72, %v109
    %v114 = vmul.f32 %v75, %v109
    %v115 = vmul.f32 %v78, %v109
    %v116 = vmul.f32 %v81, %v109
    %v117 = vmul.f32 %v84, %v109
    %v118 = vmul.f32 %v87, %v109
    %v119 = vmul.f32 %v90, %v109
    %v120 = vmul.f32 %v93, %v109
    %v121 = vmul.f32 %v96, %v109
    %v122 = vmul.f32 %v99, %v109
    %v123 = vmul.f32 %v102, %v109
    %v124 = vmul.f32 %v105, %v109
    %v125 = vmul.f32 %v108, %v109
    %v126 = vld [vmem:[%s1] sm:$0xf]
    %v127 = vld [vmem:[%s2] sm:$0xff]
    %v128 = vld [vmem:[%s2 + $0x8] sm:$0xff]
    %v129 = vld [vmem:[%s2 + $0x10] sm:$0xff]
    %v130 = vld [vmem:[%s2 + $0x18] sm:$0xff]
    %v131 = vld [vmem:[%s2 + $0x20] sm:$0xff]
    %v132 = vld [vmem:[%s2 + $0x28] sm:$0xff]
    %v133 = vld [vmem:[%s2 + $0x30] sm:$0xff]
    %v134 = vld [vmem:[%s2 + $0x38] sm:$0xff]
    %v151 = vlaneseq
    %v152 = vand.u32 %v151, 127
    %v153 = vlaneseq
    %v154 = vshrl.u32 %v153, 7
    %v155 = vsub.s32 %v152, %v154
    %v156 = vrot.slane %v110, %v155
    %v157 = vadd.s32 %v152, 4294967288
    %v158 = vlaneseq
    %v159 = vshrl.u32 %v158, 7
    %v160 = vsub.s32 %v157, %v159
    %v161 = vrot.slane %v111, %v160
    %vm162 = vcmask 130112
    %v163 = vsel %vm162, %v161, %v156
    %v164 = vadd.s32 %v152, 4294967280
    %v165 = vlaneseq
    %v166 = vshrl.u32 %v165, 7
    %v167 = vsub.s32 %v164, %v166
    %v168 = vrot.slane %v112, %v167
    %vm169 = vcmask 195712
    %v170 = vsel %vm169, %v168, %v163
    %v171 = vadd.s32 %v152, 4294967272
    %v172 = vlaneseq
    %v173 = vshrl.u32 %v172, 7
    %v174 = vsub.s32 %v171, %v173
    %v175 = vrot.slane %v113, %v174
    %vm176 = vcmask 261312
    %v177 = vsel %vm176, %v175, %v170
    %v178 = vadd.s32 %v152, 4294967264
    %v179 = vlaneseq
    %v180 = vshrl.u32 %v179, 7
    %v181 = vsub.s32 %v178, %v180
    %v182 = vrot.slane %v114, %v181
    %vm183 = vcmask 326912
    %v184 = vsel %vm183, %v182, %v177
    %v185 = vadd.s32 %v152, 4294967256
    %v186 = vlaneseq
    %v187 = vshrl.u32 %v186, 7
    %v188 = vsub.s32 %v185, %v187
    %v189 = vrot.slane %v115, %v188
    %vm190 = vcmask 392512
    %v191 = vsel %vm190, %v189, %v184
    %v192 = vadd.s32 %v152, 4294967248
    %v193 = vlaneseq
    %v194 = vshrl.u32 %v193, 7
    %v195 = vsub.s32 %v192, %v194
    %v196 = vrot.slane %v116, %v195
    %vm197 = vcmask 458112
    %v198 = vsel %vm197, %v196, %v191
    %v199 = vadd.s32 %v152, 4294967240
    %v200 = vlaneseq
    %v201 = vshrl.u32 %v200, 7
    %v202 = vsub.s32 %v199, %v201
    %v203 = vrot.slane %v117, %v202
    %vm204 = vcmask 523712
    %v205 = vsel %vm204, %v203, %v198
    %v206 = vlaneseq
    %v207 = vshrl.u32 %v206, 7
    %v208 = vsub.s32 %v152, %v207
    %v209 = vrot.slane %v118, %v208
    %v210 = vlaneseq
    %v211 = vshrl.u32 %v210, 7
    %v212 = vsub.s32 %v157, %v211
    %v213 = vrot.slane %v119, %v212
    %v214 = vsel %vm162, %v213, %v209
    %v215 = vlaneseq
    %v216 = vshrl.u32 %v215, 7
    %v217 = vsub.s32 %v164, %v216
    %v218 = vrot.slane %v120, %v217
    %v219 = vsel %vm169, %v218, %v214
    %v220 = vlaneseq
    %v221 = vshrl.u32 %v220, 7
    %v222 = vsub.s32 %v171, %v221
    %v223 = vrot.slane %v121, %v222
    %v224 = vsel %vm176, %v223, %v219
    %v225 = vlaneseq
    %v226 = vshrl.u32 %v225, 7
    %v227 = vsub.s32 %v178, %v226
    %v228 = vrot.slane %v122, %v227
    %v229 = vsel %vm183, %v228, %v224
    %v230 = vlaneseq
    %v231 = vshrl.u32 %v230, 7
    %v232 = vsub.s32 %v185, %v231
    %v233 = vrot.slane %v123, %v232
    %v234 = vsel %vm190, %v233, %v229
    %v235 = vlaneseq
    %v236 = vshrl.u32 %v235, 7
    %v237 = vsub.s32 %v192, %v236
    %v238 = vrot.slane %v124, %v237
    %v239 = vsel %vm197, %v238, %v234
    %v240 = vlaneseq
    %v241 = vshrl.u32 %v240, 7
    %v242 = vsub.s32 %v199, %v241
    %v243 = vrot.slane %v125, %v242
    %v244 = vsel %vm204, %v243, %v239
    %vm245 = vcmask 1041409
    %v246 = vsel %vm245, %v244, %v205
    %vm247 = vcmask 523264
    %v248 = vsel %vm247, %v246, 0
    %v251 = vsel %vm247, %v126, 0
    %253 = vmatprep.subr.mxu0 0.0
    %254 = vmatpush1.xpose.msra.mxu0 %v251
    %255 = vmatprep.subr.mxu0 0.0
    %256 = vmatpush1.xpose.msra.mxu0 0.0
    %257 = vmatprep.subr.mxu0 0.0
    %258 = vmatpush1.xpose.msra.mxu0 0.0
    %259 = vmatprep.subr.mxu0 0.0
    %260 = vmatpush1.xpose.msra.mxu0 0.0
    %261 = vmatprep.subr.mxu0 0.0
    %262 = vmatpush1.xpose.msra.mxu0 0.0
    %263 = vmatprep.subr.mxu0 0.0
    %264 = vmatpush1.xpose.msra.mxu0 0.0
    %265 = vmatprep.subr.mxu0 0.0
    %266 = vmatpush1.xpose.msra.mxu0 0.0
    %267 = vmatprep.subr.mxu0 0.0
    %268 = vmatpush1.xpose.msra.mxu0 0.0
    %269 = vmatprep.subr.mxu0 0.0
    %270 = vmatpush1.xpose.msra.mxu0 0.0
    %271 = vmatprep.subr.mxu0 0.0
    %272 = vmatpush1.xpose.msra.mxu0 0.0
    %273 = vmatprep.subr.mxu0 0.0
    %274 = vmatpush1.xpose.msra.mxu0 0.0
    %275 = vmatprep.subr.mxu0 0.0
    %276 = vmatpush1.xpose.msra.mxu0 0.0
    %277 = vmatprep.subr.mxu0 0.0
    %278 = vmatpush1.xpose.msra.mxu0 0.0
    %279 = vmatprep.subr.mxu0 0.0
    %280 = vmatpush1.xpose.msra.mxu0 0.0
    %281 = vmatprep.subr.mxu0 0.0
    %282 = vmatpush1.xpose.msra.mxu0 0.0
    %283 = vmatprep.subr.mxu0 0.0
    %284 = vmatpush1.xpose.msra.mxu0 0.0
    %285 = vmatprep.subr.mxu0 0.0
    %286 = vmatpush1.xpose.msra.mxu0 0.0
    %287 = vmatprep.subr.mxu0 0.0
    %288 = vmatpush1.xpose.msra.mxu0 0.0
    %289 = vmatprep.subr.mxu0 0.0
    %290 = vmatpush1.xpose.msra.mxu0 0.0
    %291 = vmatprep.subr.mxu0 0.0
    %292 = vmatpush1.xpose.msra.mxu0 0.0
    %293 = vmatprep.subr.mxu0 0.0
    %294 = vmatpush1.xpose.msra.mxu0 0.0
    %295 = vmatprep.subr.mxu0 0.0
    %296 = vmatpush1.xpose.msra.mxu0 0.0
    %297 = vmatprep.subr.mxu0 0.0
    %298 = vmatpush1.xpose.msra.mxu0 0.0
    %299 = vmatprep.subr.mxu0 0.0
    %300 = vmatpush1.xpose.msra.mxu0 0.0
    %301 = vmatprep.subr.mxu0 0.0
    %302 = vmatpush1.xpose.msra.mxu0 0.0
    %303 = vmatprep.subr.mxu0 0.0
    %304 = vmatpush1.xpose.msra.mxu0 0.0
    %305 = vmatprep.subr.mxu0 0.0
    %306 = vmatpush1.xpose.msra.mxu0 0.0
    %307 = vmatprep.subr.mxu0 0.0
    %308 = vmatpush1.xpose.msra.mxu0 0.0
    %309 = vmatprep.subr.mxu0 0.0
    %310 = vmatpush1.xpose.msra.mxu0 0.0
    %311 = vmatprep.subr.mxu0 0.0
    %312 = vmatpush1.xpose.msra.mxu0 0.0
    %313 = vmatprep.subr.mxu0 0.0
    %314 = vmatpush1.xpose.msra.mxu0 0.0
    %315 = vmatprep.subr.mxu0 0.0
    %316 = vmatpush1.xpose.msra.mxu0 0.0
    %317 = vmatprep.mubr.f32.mxu0 0.0
    %318 = vmatmul.mubr.f32.gmra.mrb[0].mxu0 %v248
    %v319 = vpop.f32.mrb[0].mxu0
    %v320 = vadd.f32 0.0, %v319
    %v321 = vpop.f32.mrb[0].mxu0
    %322 = vdwg.mxu0
    %v323 = vmax.f32 %v320, 0.0
    %vm324 = vcmask 31744
    %v326 = vsel %vm324, %v323, 0
    %v329 = vsel %vm324, %v127, 0
    %v332 = vsel %vm324, %v128, 0
    %v335 = vsel %vm324, %v129, 0
    %v338 = vsel %vm324, %v130, 0
    %v341 = vsel %vm324, %v131, 0
    %v344 = vsel %vm324, %v132, 0
    %v347 = vsel %vm324, %v133, 0
    %v350 = vsel %vm324, %v134, 0
    %352 = vmatprep.subr.mxu0 0.0
    %353 = vmatpush1.xpose.msra.mxu0 %v329
    %354 = vmatprep.subr.mxu0 0.0
    %355 = vmatpush1.xpose.msra.mxu0 %v332
    %356 = vmatprep.subr.mxu0 0.0
    %357 = vmatpush1.xpose.msra.mxu0 %v335
    %358 = vmatprep.subr.mxu0 0.0
    %359 = vmatpush1.xpose.msra.mxu0 %v338
    %360 = vmatprep.subr.mxu0 0.0
    %361 = vmatpush1.xpose.msra.mxu0 %v341
    %362 = vmatprep.subr.mxu0 0.0
    %363 = vmatpush1.xpose.msra.mxu0 %v344
    %364 = vmatprep.subr.mxu0 0.0
    %365 = vmatpush1.xpose.msra.mxu0 %v347
    %366 = vmatprep.subr.mxu0 0.0
    %367 = vmatpush1.xpose.msra.mxu0 %v350
    %368 = vmatprep.subr.mxu0 0.0
    %369 = vmatpush1.xpose.msra.mxu0 0.0
    %370 = vmatprep.subr.mxu0 0.0
    %371 = vmatpush1.xpose.msra.mxu0 0.0
    %372 = vmatprep.subr.mxu0 0.0
    %373 = vmatpush1.xpose.msra.mxu0 0.0
    %374 = vmatprep.subr.mxu0 0.0
    %375 = vmatpush1.xpose.msra.mxu0 0.0
    %376 = vmatprep.subr.mxu0 0.0
    %377 = vmatpush1.xpose.msra.mxu0 0.0
    %378 = vmatprep.subr.mxu0 0.0
    %379 = vmatpush1.xpose.msra.mxu0 0.0
    %380 = vmatprep.subr.mxu0 0.0
    %381 = vmatpush1.xpose.msra.mxu0 0.0
    %382 = vmatprep.subr.mxu0 0.0
    %383 = vmatpush1.xpose.msra.mxu0 0.0
    %384 = vmatprep.subr.mxu0 0.0
    %385 = vmatpush1.xpose.msra.mxu0 0.0
    %386 = vmatprep.subr.mxu0 0.0
    %387 = vmatpush1.xpose.msra.mxu0 0.0
    %388 = vmatprep.subr.mxu0 0.0
    %389 = vmatpush1.xpose.msra.mxu0 0.0
    %390 = vmatprep.subr.mxu0 0.0
    %391 = vmatpush1.xpose.msra.mxu0 0.0
    %392 = vmatprep.subr.mxu0 0.0
    %393 = vmatpush1.xpose.msra.mxu0 0.0
    %394 = vmatprep.subr.mxu0 0.0
    %395 = vmatpush1.xpose.msra.mxu0 0.0
    %396 = vmatprep.subr.mxu0 0.0
    %397 = vmatpush1.xpose.msra.mxu0 0.0
    %398 = vmatprep.subr.mxu0 0.0
    %399 = vmatpush1.xpose.msra.mxu0 0.0
    %400 = vmatprep.subr.mxu0 0.0
    %401 = vmatpush1.xpose.msra.mxu0 0.0
    %402 = vmatprep.subr.mxu0 0.0
    %403 = vmatpush1.xpose.msra.mxu0 0.0
    %404 = vmatprep.subr.mxu0 0.0
    %405 = vmatpush1.xpose.msra.mxu0 0.0
    %406 = vmatprep.subr.mxu0 0.0
    %407 = vmatpush1.xpose.msra.mxu0 0.0
    %408 = vmatprep.subr.mxu0 0.0
    %409 = vmatpush1.xpose.msra.mxu0 0.0
    %410 = vmatprep.subr.mxu0 0.0
    %411 = vmatpush1.xpose.msra.mxu0 0.0
    %412 = vmatprep.subr.mxu0 0.0
    %413 = vmatpush1.xpose.msra.mxu0 0.0
    %414 = vmatprep.subr.mxu0 0.0
    %415 = vmatpush1.xpose.msra.mxu0 0.0
    %416 = vmatprep.mubr.f32.mxu0 0.0
    %417 = vmatmul.mubr.f32.gmra.mrb[0].mxu0 %v326
    %v418 = vpop.f32.mrb[0].mxu0
    %v419 = vadd.f32 0.0, %v418
    %v420 = vpop.f32.mrb[0].mxu0
    %421 = vdwg.mxu0
    %v422 = vxor.u32 %v419, 2147483648
    %v423 = vmul.f32 %v422, 1.442695
    %v424 = vpow.pop %v423
    %v425 = vadd.f32 %v424, 1.0
    %v426 = vrcp.pop %v425
    %v427 = vmul.f32 1.0, %v426
    %v428 = vlaneseq
    %v429 = vshrl.u32 %v428, 7
    %v430 = vsub.s32 0, %v429
    %v431 = vrot.slane %v427, %v430
    %433 = vbcast.lane.b32.xlu0 %v431, 256
    %v434 = vpop.permute.xlu0 %433
    %s436 = sor.u32 256, 8
    %437 = vbcast.lane.b32.xlu0 %v431, %s436
    %v438 = vpop.permute.xlu0 %437
    %s440 = sor.u32 256, 16
    %441 = vbcast.lane.b32.xlu0 %v431, %s440
    %v442 = vpop.permute.xlu0 %441
    %s444 = sor.u32 256, 24
    %445 = vbcast.lane.b32.xlu0 %v431, %s444
    %v446 = vpop.permute.xlu0 %445
    %s448 = sor.u32 256, 32
    %449 = vbcast.lane.b32.xlu0 %v431, %s448
    %v450 = vpop.permute.xlu0 %449
    %s452 = sor.u32 256, 40
    %453 = vbcast.lane.b32.xlu0 %v431, %s452
    %v454 = vpop.permute.xlu0 %453
    %s456 = sor.u32 256, 48
    %457 = vbcast.lane.b32.xlu0 %v431, %s456
    %v458 = vpop.permute.xlu0 %457
    %s460 = sor.u32 256, 56
    %461 = vbcast.lane.b32.xlu0 %v431, %s460
    %v462 = vpop.permute.xlu0 %461
    %v463 = vlaneseq
    %v464 = vshrl.u32 %v463, 7
    %v465 = vsub.s32 1, %v464
    %v466 = vrot.slane %v427, %v465
    %468 = vbcast.lane.b32.xlu0 %v466, 256
    %v469 = vpop.permute.xlu0 %468
    %s471 = sor.u32 256, 8
    %472 = vbcast.lane.b32.xlu0 %v466, %s471
    %v473 = vpop.permute.xlu0 %472
    %s475 = sor.u32 256, 16
    %476 = vbcast.lane.b32.xlu0 %v466, %s475
    %v477 = vpop.permute.xlu0 %476
    %s479 = sor.u32 256, 24
    %480 = vbcast.lane.b32.xlu0 %v466, %s479
    %v481 = vpop.permute.xlu0 %480
    %s483 = sor.u32 256, 32
    %484 = vbcast.lane.b32.xlu0 %v466, %s483
    %v485 = vpop.permute.xlu0 %484
    %s487 = sor.u32 256, 40
    %488 = vbcast.lane.b32.xlu0 %v466, %s487
    %v489 = vpop.permute.xlu0 %488
    %s491 = sor.u32 256, 48
    %492 = vbcast.lane.b32.xlu0 %v466, %s491
    %v493 = vpop.permute.xlu0 %492
    %s495 = sor.u32 256, 56
    %496 = vbcast.lane.b32.xlu0 %v466, %s495
    %v497 = vpop.permute.xlu0 %496
    %v498 = vmul.f32 %v29, %v434
    %v499 = vmul.f32 %v30, %v434
    %v500 = vmul.f32 %v31, %v438
    %v501 = vmul.f32 %v32, %v438
    %v502 = vmul.f32 %v33, %v442
    %v503 = vmul.f32 %v34, %v442
    %v504 = vmul.f32 %v35, %v446
    %v505 = vmul.f32 %v36, %v446
    %v506 = vmul.f32 %v37, %v450
    %v507 = vmul.f32 %v38, %v450
    %v508 = vmul.f32 %v39, %v454
    %v509 = vmul.f32 %v40, %v454
    %v510 = vmul.f32 %v41, %v458
    %v511 = vmul.f32 %v42, %v458
    %v512 = vmul.f32 %v43, %v462
    %v513 = vmul.f32 %v44, %v462
    %v514 = vmul.f32 %v45, %v469
    %v515 = vmul.f32 %v46, %v469
    %v516 = vmul.f32 %v47, %v473
    %v517 = vmul.f32 %v48, %v473
    %v518 = vmul.f32 %v49, %v477
    %v519 = vmul.f32 %v50, %v477
    %v520 = vmul.f32 %v51, %v481
    %v521 = vmul.f32 %v52, %v481
    %v522 = vmul.f32 %v53, %v485
    %v523 = vmul.f32 %v54, %v485
    %v524 = vmul.f32 %v55, %v489
    %v525 = vmul.f32 %v56, %v489
    %v526 = vmul.f32 %v57, %v493
    %v527 = vmul.f32 %v58, %v493
    %v528 = vmul.f32 %v59, %v497
    %v529 = vmul.f32 %v60, %v497
    %530 = vst [vmem:[#allocation5] sm:$0xff] %v498
    %531 = vst [vmem:[#allocation5 + $0x8] sm:$0xff] %v499
    %532 = vst [vmem:[#allocation5 + $0x10] sm:$0xff] %v500
    %533 = vst [vmem:[#allocation5 + $0x18] sm:$0xff] %v501
    %534 = vst [vmem:[#allocation5 + $0x20] sm:$0xff] %v502
    %535 = vst [vmem:[#allocation5 + $0x28] sm:$0xff] %v503
    %536 = vst [vmem:[#allocation5 + $0x30] sm:$0xff] %v504
    %537 = vst [vmem:[#allocation5 + $0x38] sm:$0xff] %v505
    %538 = vst [vmem:[#allocation5 + $0x40] sm:$0xff] %v506
    %539 = vst [vmem:[#allocation5 + $0x48] sm:$0xff] %v507
    %540 = vst [vmem:[#allocation5 + $0x50] sm:$0xff] %v508
    %541 = vst [vmem:[#allocation5 + $0x58] sm:$0xff] %v509
    %542 = vst [vmem:[#allocation5 + $0x60] sm:$0xff] %v510
    %543 = vst [vmem:[#allocation5 + $0x68] sm:$0xff] %v511
    %544 = vst [vmem:[#allocation5 + $0x70] sm:$0xff] %v512
    %545 = vst [vmem:[#allocation5 + $0x78] sm:$0xff] %v513
    %546 = vst [vmem:[#allocation5 + $0x80] sm:$0xff] %v514
    %547 = vst [vmem:[#allocation5 + $0x88] sm:$0xff] %v515
    %548 = vst [vmem:[#allocation5 + $0x90] sm:$0xff] %v516
    %549 = vst [vmem:[#allocation5 + $0x98] sm:$0xff] %v517
    %550 = vst [vmem:[#allocation5 + $0xa0] sm:$0xff] %v518
    %551 = vst [vmem:[#allocation5 + $0xa8] sm:$0xff] %v519
    %552 = vst [vmem:[#allocation5 + $0xb0] sm:$0xff] %v520
    %553 = vst [vmem:[#allocation5 + $0xb8] sm:$0xff] %v521
    %554 = vst [vmem:[#allocation5 + $0xc0] sm:$0xff] %v522
    %555 = vst [vmem:[#allocation5 + $0xc8] sm:$0xff] %v523
    %556 = vst [vmem:[#allocation5 + $0xd0] sm:$0xff] %v524
    %557 = vst [vmem:[#allocation5 + $0xd8] sm:$0xff] %v525
    %558 = vst [vmem:[#allocation5 + $0xe0] sm:$0xff] %v526
    %559 = vst [vmem:[#allocation5 + $0xe8] sm:$0xff] %v527
    %560 = vst [vmem:[#allocation5 + $0xf0] sm:$0xff] %v528
    %561 = vst [vmem:[#allocation5 + $0xf8] sm:$0xff] %v529
    // Predicated region
    $region18: #{tpu_custom_call.1} parent=1 // pred_check
      _
    $region19: #{tpu_custom_call.1} parent=1 // pred_check_branch
      %563 = sbr.rel (0) target = $region21
    $region20: #{tpu_custom_call.1} parent=1 // pred_region
      %s565 = ssub.s32 4096, 4096
      %566 = vsyncadd [#allocation4], %s565
      %s567 = sshll.u32 [#allocation5], 4
      %s568 = int_to_ptr.vmem [resolvable:$true] %s567
      %573 = dma.vmem_to_hbm [thread:$0]  %s568, 4096, %s3, [#allocation4], 256, 256, 16
    $region21: #{tpu_custom_call.1} parent=1 // pred_fallthru
      _
    // Predicated region
    $region22: #{tpu_custom_call.1} parent=1 // pred_check
      _
    $region23: #{tpu_custom_call.1} parent=1 // pred_check_branch
      %575 = sbr.rel (0) target = $region25
    $region24: #{tpu_custom_call.1} parent=1 // pred_region
      %576 = dma.done [#allocation4], 4096
    $region25: #{tpu_custom_call.1} parent=1 // pred_fallthru
      _
    %577 = vsyncpa [#allocation3], 1
    %578 = vsyncpa [#allocation4], 1

</llo_original>
